<compile_context>
chip_gen: v6e
topology: v6e:2x2x1
jax: 0.10.0
libtpu: 0.0.40
codegen_flags: <defaults>
</compile_context>

<pallas_src>
import functools
import math

import jax
import jax.numpy as jnp
from jax import lax
from jax.experimental import pallas as pl
from jax.experimental.pallas import tpu as pltpu


# Slab threshold (f32 footprint of one batch's (C, HW)) for the fused path:
# double-buffered in+out + the f32 reduction temp stay well under the scoped
# VMEM limit below, which itself is safe on v7x's 64 MiB physical VMEM.
_FUSED_SLAB_F32_BYTES = 8 * 1024 * 1024
# Two-pass block-size target: compromise between 8 MiB (v5e/v6e) and 4-6 MiB
# (v7x) recommendations; double-buffered in+out stays under the limit below.
_TARGET_BLOCK_BYTES = 6 * 1024 * 1024
# Scoped VMEM limit: > v5e/v6e 16/32 MiB defaults, < v7x 64 MiB physical.
_VMEM_LIMIT_BYTES = 48 * 1024 * 1024


def make_divisible(v, divisor=8, min_value=None, round_limit=0.9):
    # timm-style make_divisible (as used by cvm's blocks).
    min_value = min_value or divisor
    new_v = max(min_value, int(v + divisor / 2) // divisor * divisor)
    if new_v < round_limit * v:
        new_v += divisor
    return new_v


def _choose_hw_tile(hw, c, itemsize, target_block_bytes=_TARGET_BLOCK_BYTES):
    """Largest HW tile (multiple of 128, or full HW) with block <= target."""
    row_bytes = c * itemsize
    if hw * row_bytes <= target_block_bytes:
        return hw
    max_lanes = max(128, int(target_block_bytes // row_bytes) // 128 * 128)
    # Wide rows: keep at least 512 lanes (as long as double-buffered in+out
    # blocks still fit the scoped VMEM limit) -- narrow tiles waste 15-50% of
    # HBM bandwidth, far more than the cheap in-kernel tail mask costs.
    if row_bytes >= 4 * 1024:
        max_ok = int((_VMEM_LIMIT_BYTES // 5) // row_bytes) // 128 * 128
        max_lanes = max(max_lanes, min(512, max(128, max_ok)))
    # Never ask for more lanes than HW rounded up to the 128-lane grain.
    max_lanes = min(max_lanes, pl.cdiv(hw, 128) * 128)
    # Prefer a tile that divides HW exactly (no masked tail), but never shrink
    # below half of max_lanes (or below 512 lanes) just to avoid the mask.
    floor_lanes = min(max_lanes, max(512, max_lanes // 2))
    for t in range(max_lanes, floor_lanes - 1, -128):
        if hw % t == 0:
            return t
    return max_lanes  # non-divisible: tail tile is masked in-kernel


def _stacked_mlp_gate(pooled, w1, b1, w2, b2):
    """pooled: (C, 2) columns = [max | avg]. Shared-weight MLP on both columns,
    then sigmoid(sum of the two logit columns) -> (C, 1) gate (f32)."""
    # TODO(synk): activation_fn()/gate_fn are config-driven in the reference
    # module; ReLU + Sigmoid assumed here.
    h = jnp.dot(w1, pooled, preferred_element_type=jnp.float32) + b1      # (RD, 2)
    h = jnp.maximum(h, 0.0)
    y = jnp.dot(w2, h, preferred_element_type=jnp.float32) + b2           # (C, 2)
    # b2 contributes to BOTH columns => logits contain 2*b2, matching the
    # PyTorch reference (mlp applied to each pooled vector, then summed).
    logits = y[:, 0:1] + y[:, 1:2]                                        # (C, 1)
    return jax.nn.sigmoid(logits)


# ---------------------------------------------------------------------------
# Fused single-pass kernel: grid=(B,). Whole (C, HW) slab is VMEM resident.
# ---------------------------------------------------------------------------
def _fused_kernel(x_ref, w1_ref, b1_ref, w2_ref, b2_ref, o_ref, pooled_ref,
                  *, inv_hw):
    x = x_ref[0]                                          # (C, HW) native dtype
    xf = x.astype(jnp.float32)
    pooled_ref[:, 0:1] = jnp.max(xf, axis=1, keepdims=True)
    pooled_ref[:, 1:2] = jnp.sum(xf, axis=1, keepdims=True) * inv_hw
    g = _stacked_mlp_gate(pooled_ref[...], w1_ref[...], b1_ref[...],
                          w2_ref[...], b2_ref[...])       # (C, 1) f32
    # Gate multiply in the input dtype (bf16 native on v6e/v7x; lane-dense vst).
    o_ref[0] = (x * g.astype(x.dtype)).astype(o_ref.dtype)


# ---------------------------------------------------------------------------
# Two-pass fallback: pass 1 = pooling over HW tiles + MLP + sigmoid gate.
# ---------------------------------------------------------------------------
def _pool_gate_kernel(x_ref, w1_ref, b1_ref, w2_ref, b2_ref, gate_ref, acc_ref,
                      *, hw, hw_tile, inv_hw, needs_mask):
    """Grid (B, n_hw_tiles): accumulate spatial max/sum per channel, then at
    the last HW tile run the shared-weight stacked MLP + sigmoid gate."""
    t = pl.program_id(1)
    x = x_ref[0].astype(jnp.float32)                      # (C, hw_tile)

    if needs_mask:
        # Last tile may overhang HW; mask padded lanes out of the reductions.
        col = lax.broadcasted_iota(jnp.int32, x.shape, 1) + t * hw_tile
        valid = col < hw
        x_max_src = jnp.where(valid, x, -jnp.inf)
        x_sum_src = jnp.where(valid, x, 0.0)
    else:
        x_max_src = x
        x_sum_src = x

    tile_max = jnp.max(x_max_src, axis=1, keepdims=True)  # (C, 1)
    tile_sum = jnp.sum(x_sum_src, axis=1, keepdims=True)  # (C, 1)

    @pl.when(t == 0)
    def _init():
        acc_ref[:, 0:1] = tile_max
        acc_ref[:, 1:2] = tile_sum

    @pl.when(t > 0)
    def _update():
        acc_ref[:, 0:1] = jnp.maximum(acc_ref[:, 0:1], tile_max)
        acc_ref[:, 1:2] = acc_ref[:, 1:2] + tile_sum

    @pl.when(t == pl.num_programs(1) - 1)
    def _finalize():
        # Sum -> mean via a scalar-literal multiply in place (no constant
        # arrays are constructed inside the kernel -> no capture error).
        acc_ref[:, 1:2] = acc_ref[:, 1:2] * inv_hw
        gate_ref[0] = _stacked_mlp_gate(acc_ref[...], w1_ref[...], b1_ref[...],
                                        w2_ref[...], b2_ref[...])


def _apply_gate_kernel(gate_ref, x_ref, o_ref):
    """Grid (B, n_hw_tiles): out = x * gate (gate broadcast over HW lanes).
    Multiply done in the input dtype (f32 gate cast once per block)."""
    g = gate_ref[0].astype(x_ref.dtype)                   # (C, 1)
    o_ref[0] = (x_ref[0] * g).astype(o_ref.dtype)


def channel_attention(x_nchw, w1, b1, w2, b2, *, hw_tile=None, fused=None,
                      donate_x=False):
    """x_nchw: (B, C, H, W). w1: (RD, C), b1: (RD,), w2: (C, RD), b2: (C,).
    Weights in PyTorch Conv1x1 (out, in) layout. Returns (B, C, H, W)."""
    B, C, H, W = x_nchw.shape
    HW = H * W
    RD = w1.shape[0]
    assert w1.shape == (RD, C) and w2.shape == (C, RD)

    # Free row-major reshape; stays NCHW (no HBM transpose traffic).
    x3 = x_nchw.reshape(B, C, HW)
    w1f = w1.astype(jnp.float32)
    w2f = w2.astype(jnp.float32)
    b1c = b1.reshape(RD, 1).astype(jnp.float32)
    b2c = b2.reshape(C, 1).astype(jnp.float32)

    itemsize = jnp.dtype(x_nchw.dtype).itemsize
    inv_hw = 1.0 / HW
    vmem_limit = _VMEM_LIMIT_BYTES

    if fused is None:
        fused = (C * HW * 4) <= _FUSED_SLAB_F32_BYTES

    if fused:
        # Single pass: read x once, write out once (2x HBM traffic total).
        out3 = pl.pallas_call(
            functools.partial(_fused_kernel, inv_hw=inv_hw),
            out_shape=jax.ShapeDtypeStruct((B, C, HW), x_nchw.dtype),
            grid_spec=pltpu.PrefetchScalarGridSpec(
                num_scalar_prefetch=0,
                grid=(B,),
                in_specs=[
                    pl.BlockSpec((1, C, HW), lambda b: (b, 0, 0)),
                    pl.BlockSpec((RD, C), lambda b: (0, 0)),
                    pl.BlockSpec((RD, 1), lambda b: (0, 0)),
                    pl.BlockSpec((C, RD), lambda b: (0, 0)),
                    pl.BlockSpec((C, 1), lambda b: (0, 0)),
                ],
                out_specs=pl.BlockSpec((1, C, HW), lambda b: (b, 0, 0)),
                scratch_shapes=[pltpu.VMEM((C, 2), jnp.float32)],
            ),
            compiler_params=pltpu.CompilerParams(
                dimension_semantics=("parallel",),
                vmem_limit_bytes=vmem_limit),
            input_output_aliases=({0: 0} if donate_x else {}),
        )(x3, w1f, b1c, w2f, b2c)
        return out3.reshape(B, C, H, W)

    # ---- Two-pass fallback: slab does not fit VMEM (or forced). ----
    if hw_tile is None:
        hw_tile = _choose_hw_tile(HW, C, itemsize)
    n_t = pl.cdiv(HW, hw_tile)
    needs_mask = (HW % hw_tile) != 0

    # Pass 1: pooling over HW tiles + MLP + sigmoid -> per-(batch,channel) gate.
    # (On v7x with B==1 a 2-way core split of the HW reduction would keep both
    #  TensorCores busy; omitted here -- pass 1 is bandwidth bound anyway.)
    gate = pl.pallas_call(
        functools.partial(_pool_gate_kernel, hw=HW, hw_tile=hw_tile,
                          inv_hw=inv_hw, needs_mask=needs_mask),
        out_shape=jax.ShapeDtypeStruct((B, C, 1), jnp.float32),
        grid_spec=pltpu.PrefetchScalarGridSpec(
            num_scalar_prefetch=0,
            grid=(B, n_t),
            in_specs=[
                pl.BlockSpec((1, C, hw_tile), lambda b, t: (b, 0, t)),
                pl.BlockSpec((RD, C), lambda b, t: (0, 0)),
                pl.BlockSpec((RD, 1), lambda b, t: (0, 0)),
                pl.BlockSpec((C, RD), lambda b, t: (0, 0)),
                pl.BlockSpec((C, 1), lambda b, t: (0, 0)),
            ],
            out_specs=pl.BlockSpec((1, C, 1), lambda b, t: (b, 0, 0)),
            scratch_shapes=[pltpu.VMEM((C, 2), jnp.float32)],
        ),
        compiler_params=pltpu.CompilerParams(
            dimension_semantics=("parallel", "arbitrary"),
            vmem_limit_bytes=vmem_limit),
    )(x3, w1f, b1c, w2f, b2c)

    # Pass 2: broadcast gate over HW and scale x (lane-dense stores, NCHW).
    # Note: a non-divisible tail tile relies on Pallas clipping partial
    # trailing-block writebacks (correct with BlockSpec auto-pipelining).
    out3 = pl.pallas_call(
        _apply_gate_kernel,
        out_shape=jax.ShapeDtypeStruct((B, C, HW), x_nchw.dtype),
        grid_spec=pltpu.PrefetchScalarGridSpec(
            num_scalar_prefetch=0,
            grid=(B, n_t),
            in_specs=[
                pl.BlockSpec((1, C, 1), lambda b, t: (b, 0, 0)),
                pl.BlockSpec((1, C, hw_tile), lambda b, t: (b, 0, t)),
            ],
            out_specs=pl.BlockSpec((1, C, hw_tile), lambda b, t: (b, 0, t)),
        ),
        compiler_params=pltpu.CompilerParams(
            dimension_semantics=("parallel", "parallel"),
            vmem_limit_bytes=vmem_limit),
        input_output_aliases=({1: 0} if donate_x else {}),
    )(gate, x3)

    return out3.reshape(B, C, H, W)


def reference_channel_attention(x, w1, b1, w2, b2):
    """Pure-JAX reference mirroring the PyTorch forward (NCHW)."""
    xf = x.astype(jnp.float32)
    max_p = jnp.max(xf, axis=(2, 3))    # (B, C)
    avg_p = jnp.mean(xf, axis=(2, 3))   # (B, C)

    def mlp(p):  # (B, C)
        h = jnp.maximum(p @ w1.T + b1, 0.0)
        return h @ w2.T + b2

    gate = jax.nn.sigmoid(mlp(max_p) + mlp(avg_p))          # (B, C)
    return (xf * gate[:, :, None, None]).astype(x.dtype)


if __name__ == "__main__":
    key = jax.random.PRNGKey(0)
    kx, k1, k2, k3, k4, kx2 = jax.random.split(key, 6)

    B, C, H, W = 2, 32, 16, 16
    RD = make_divisible(C * (1 / 8), 8)   # = 8

    x = jax.random.normal(kx, (B, C, H, W), dtype=jnp.float32)
    # Conv1x1 weights in PyTorch (out, in) layout.
    w1 = jax.random.normal(k1, (RD, C), dtype=jnp.float32) * (1.0 / math.sqrt(C))
    b1 = jax.random.normal(k2, (RD,), dtype=jnp.float32) * 0.1
    w2 = jax.random.normal(k3, (C, RD), dtype=jnp.float32) * (1.0 / math.sqrt(RD))
    b2 = jax.random.normal(k4, (C,), dtype=jnp.float32) * 0.1

    # 1) Fused single-pass path (default: slab trivially VMEM-resident).
    out = jax.block_until_ready(channel_attention(x, w1, b1, w2, b2))
    ref = reference_channel_attention(x, w1, b1, w2, b2)
    assert out.shape == x.shape and out.dtype == x.dtype
    assert jnp.allclose(out, ref, atol=1e-5, rtol=1e-5), "mismatch (fused)"

    # 2) Fused path with a non-128-multiple HW (full-extent block, 20x20).
    H2 = W2 = 20
    x2 = jax.random.normal(kx2, (B, C, H2, W2), dtype=jnp.float32)
    ref2 = reference_channel_attention(x2, w1, b1, w2, b2)
    out2 = jax.block_until_ready(channel_attention(x2, w1, b1, w2, b2))
    assert jnp.allclose(out2, ref2, atol=1e-5, rtol=1e-5), "mismatch (fused, HW=400)"

    # 3) Two-pass fallback forced, HW tiling with a masked tail (400/128 -> 4 tiles).
    out3 = jax.block_until_ready(
        channel_attention(x2, w1, b1, w2, b2, fused=False, hw_tile=128))
    assert jnp.allclose(out3, ref2, atol=1e-5, rtol=1e-5), "mismatch (two-pass, tiled)"

    # 4) bf16 smoke test on the fused path (native-dtype gate multiply).
    xb = x.astype(jnp.bfloat16)
    outb = jax.block_until_ready(channel_attention(xb, w1, b1, w2, b2))
    refb = reference_channel_attention(xb, w1, b1, w2, b2)
    assert outb.dtype == jnp.bfloat16 and outb.shape == xb.shape
    assert jnp.allclose(outb.astype(jnp.float32), refb.astype(jnp.float32),
                        atol=5e-2, rtol=5e-2), "mismatch (bf16 fused)"

    print("KERNEL_OK")
</pallas_src>

<mosaic_0001>
module attributes {stable_mosaic.version = 11 : i64} {
  func.func @_fused_kernel(%arg0: i32, %arg1: memref<1x32x256xf32, #tpu.memory_space<vmem>>, %arg2: memref<8x32xf32, #tpu.memory_space<vmem>>, %arg3: memref<8x1xf32, #tpu.memory_space<vmem>>, %arg4: memref<32x8xf32, #tpu.memory_space<vmem>>, %arg5: memref<32x1xf32, #tpu.memory_space<vmem>>, %arg6: memref<1x32x256xf32, #tpu.memory_space<vmem>>, %arg7: memref<32x2xf32, #tpu.memory_space<vmem>>) attributes {dimension_semantics = [#tpu.dimension_semantics<parallel>], iteration_bounds = array<i64: 2>, scalar_prefetch = 0 : i64, scratch_operands = 1 : i64, tpu.core_type = #tpu.core_type<tc>, window_params = [{transform_indices = @transform_0, window_bounds = array<i64: 1, 32, 256>}, {pipeline_mode = #tpu.pipeline_mode<synchronous>, transform_indices = @transform_1, window_bounds = array<i64: 8, 32>}, {pipeline_mode = #tpu.pipeline_mode<synchronous>, transform_indices = @transform_2, window_bounds = array<i64: 8, 1>}, {pipeline_mode = #tpu.pipeline_mode<synchronous>, transform_indices = @transform_3, window_bounds = array<i64: 32, 8>}, {pipeline_mode = #tpu.pipeline_mode<synchronous>, transform_indices = @transform_4, window_bounds = array<i64: 32, 1>}, {transform_indices = @transform_5, window_bounds = array<i64: 1, 32, 256>}]} {
    %c0 = arith.constant 0 : index
    %c0_0 = arith.constant 0 : index
    %c0_1 = arith.constant 0 : index
    %0 = vector.load %arg1[%c0, %c0_0, %c0_1] : memref<1x32x256xf32, #tpu.memory_space<vmem>>, vector<1x32x256xf32>
    %1 = vector.shape_cast %0 : vector<1x32x256xf32> to vector<32x256xf32>
    %cst = arith.constant dense<0xFF800000> : vector<32xf32>
    %2 = vector.multi_reduction <maximumf>, %1, %cst [1] : vector<32x256xf32> to vector<32xf32>
    %3 = vector.shape_cast %2 : vector<32xf32> to vector<32x1xf32>
    %c0_2 = arith.constant 0 : index
    %c0_3 = arith.constant 0 : index
    %4 = vector.load %arg7[%c0_2, %c0_3] : memref<32x2xf32, #tpu.memory_space<vmem>>, vector<32x1xf32>
    tpu.vector_store %arg7[%c0_2, %c0_3], %3 {strides = array<i32>} : memref<32x2xf32, #tpu.memory_space<vmem>>, vector<32x1xf32>,
    %cst_4 = arith.constant dense<0.000000e+00> : vector<32xf32>
    %5 = vector.multi_reduction <add>, %1, %cst_4 [1] : vector<32x256xf32> to vector<32xf32>
    %6 = vector.shape_cast %5 : vector<32xf32> to vector<32x1xf32>
    %cst_5 = arith.constant 3.906250e-03 : f32
    %7 = vector.broadcast %cst_5 : f32 to vector<32x1xf32>
    %8 = arith.mulf %6, %7 : vector<32x1xf32>
    %c0_6 = arith.constant 0 : index
    %c1 = arith.constant 1 : index
    %9 = vector.load %arg7[%c0_6, %c1] : memref<32x2xf32, #tpu.memory_space<vmem>>, vector<32x1xf32>
    tpu.vector_store %arg7[%c0_6, %c1], %8 {strides = array<i32>} : memref<32x2xf32, #tpu.memory_space<vmem>>, vector<32x1xf32>,
    %c0_7 = arith.constant 0 : index
    %c0_8 = arith.constant 0 : index
    %10 = vector.load %arg7[%c0_7, %c0_8] : memref<32x2xf32, #tpu.memory_space<vmem>>, vector<32x2xf32>
    %c0_9 = arith.constant 0 : index
    %c0_10 = arith.constant 0 : index
    %11 = vector.load %arg2[%c0_9, %c0_10] : memref<8x32xf32, #tpu.memory_space<vmem>>, vector<8x32xf32>
    %c0_11 = arith.constant 0 : index
    %c0_12 = arith.constant 0 : index
    %12 = vector.load %arg3[%c0_11, %c0_12] : memref<8x1xf32, #tpu.memory_space<vmem>>, vector<8x1xf32>
    %c0_13 = arith.constant 0 : index
    %c0_14 = arith.constant 0 : index
    %13 = vector.load %arg4[%c0_13, %c0_14] : memref<32x8xf32, #tpu.memory_space<vmem>>, vector<32x8xf32>
    %c0_15 = arith.constant 0 : index
    %c0_16 = arith.constant 0 : index
    %14 = vector.load %arg5[%c0_15, %c0_16] : memref<32x1xf32, #tpu.memory_space<vmem>>, vector<32x1xf32>
    %cst_17 = arith.constant dense<0.000000e+00> : vector<8x2xf32>
    %15 = tpu.matmul %11, %10, %cst_17 {dimension_numbers = #tpu.dot_dimension_numbers<[1], [0], [0], [1], [0, 0, 1, 1], [], []>} : vector<8x32xf32>, vector<32x2xf32>, vector<8x2xf32> -> vector<8x2xf32>
    %16 = vector.broadcast %12 : vector<8x1xf32> to vector<8x2xf32>
    %17 = arith.addf %15, %16 : vector<8x2xf32>
    %cst_18 = arith.constant 0.000000e+00 : f32
    %18 = vector.broadcast %cst_18 : f32 to vector<8x2xf32>
    %19 = arith.maximumf %17, %18 : vector<8x2xf32>
    %cst_19 = arith.constant dense<0.000000e+00> : vector<32x2xf32>
    %20 = tpu.matmul %13, %19, %cst_19 {dimension_numbers = #tpu.dot_dimension_numbers<[1], [0], [0], [1], [0, 0, 1, 1], [], []>} : vector<32x8xf32>, vector<8x2xf32>, vector<32x2xf32> -> vector<32x2xf32>
    %21 = vector.broadcast %14 : vector<32x1xf32> to vector<32x2xf32>
    %22 = arith.addf %20, %21 : vector<32x2xf32>
    %23 = vector.extract_strided_slice %22 {offsets = [0, 0], sizes = [32, 1], strides = [1, 1]} : vector<32x2xf32> to vector<32x1xf32>
    %24 = vector.extract_strided_slice %22 {offsets = [0, 1], sizes = [32, 1], strides = [1, 1]} : vector<32x2xf32> to vector<32x1xf32>
    %25 = arith.addf %23, %24 : vector<32x1xf32>
    %26 = arith.negf %25 : vector<32x1xf32>
    %27 = math.exp %26 : vector<32x1xf32>
    %cst_20 = arith.constant 1.000000e+00 : f32
    %28 = vector.broadcast %cst_20 : f32 to vector<32x1xf32>
    %29 = arith.addf %28, %27 : vector<32x1xf32>
    %30 = arith.divf %28, %29 : vector<32x1xf32>
    %31 = vector.broadcast %30 : vector<32x1xf32> to vector<32x256xf32>
    %32 = arith.mulf %1, %31 : vector<32x256xf32>
    %c0_21 = arith.constant 0 : index
    %c0_22 = arith.constant 0 : index
    %c0_23 = arith.constant 0 : index
    %33 = vector.load %arg6[%c0_21, %c0_22, %c0_23] : memref<1x32x256xf32, #tpu.memory_space<vmem>>, vector<1x32x256xf32>
    %34 = vector.shape_cast %33 : vector<1x32x256xf32> to vector<32x256xf32>
    %35 = vector.shape_cast %32 : vector<32x256xf32> to vector<1x32x256xf32>
    tpu.vector_store %arg6[%c0_21, %c0_22, %c0_23], %35 {strides = array<i32>} : memref<1x32x256xf32, #tpu.memory_space<vmem>>, vector<1x32x256xf32>,
    return
  }
  func.func @transform_0(%arg0: i32) -> (i32, i32, i32) {
    %c0_i32 = arith.constant 0 : i32
    %c0_i32_0 = arith.constant 0 : i32
    %c0_i32_1 = arith.constant 0 : i32
    return %arg0, %c0_i32, %c0_i32_0 : i32, i32, i32
  }
  func.func @transform_1(%arg0: i32) -> (i32, i32) {
    %c0_i32 = arith.constant 0 : i32
    %c0_i32_0 = arith.constant 0 : i32
    %c0_i32_1 = arith.constant 0 : i32
    return %c0_i32, %c0_i32_0 : i32, i32
  }
  func.func @transform_2(%arg0: i32) -> (i32, i32) {
    %c0_i32 = arith.constant 0 : i32
    %c0_i32_0 = arith.constant 0 : i32
    %c0_i32_1 = arith.constant 0 : i32
    return %c0_i32, %c0_i32_0 : i32, i32
  }
  func.func @transform_3(%arg0: i32) -> (i32, i32) {
    %c0_i32 = arith.constant 0 : i32
    %c0_i32_0 = arith.constant 0 : i32
    %c0_i32_1 = arith.constant 0 : i32
    return %c0_i32, %c0_i32_0 : i32, i32
  }
  func.func @transform_4(%arg0: i32) -> (i32, i32) {
    %c0_i32 = arith.constant 0 : i32
    %c0_i32_0 = arith.constant 0 : i32
    %c0_i32_1 = arith.constant 0 : i32
    return %c0_i32, %c0_i32_0 : i32, i32
  }
  func.func @transform_5(%arg0: i32) -> (i32, i32, i32) {
    %c0_i32 = arith.constant 0 : i32
    %c0_i32_0 = arith.constant 0 : i32
    %c0_i32_1 = arith.constant 0 : i32
    return %arg0, %c0_i32, %c0_i32_0 : i32, i32, i32
  }
}

</mosaic_0001>

<llo_original>
// kernel: tpu_custom_call.1
$region0: #{tpu_custom_call.1}
  #allocation0 [shape = 'u32[]', space=smem, size = 0x4, offset = 0x4, fixed_abs, tag = 'smem constant byte address 0x4 - core index']
  #allocation1 [shape = 'u32[144,128]{1,0:T(1,128)}', space=vmem, size = 0x12000, scoped, tag = 'internal scratch']
  #allocation2 [shape = 'f32[32,2]{1,0:T(8,128)}', space=vmem, size = 0x4000, scoped, tag = 'scratch operand']
  %s0 = inlined_call_operand.hbm [shape: f32[2,32,256], index: 0, kind: input, shape index: {}]
  %s1 = inlined_call_operand.vmem [shape: f32[8,32], index: 1, kind: input, shape index: {}]
  %s2 = inlined_call_operand.vmem [shape: f32[8,1], index: 2, kind: input, shape index: {}]
  %s3 = inlined_call_operand.vmem [shape: f32[32,8], index: 3, kind: input, shape index: {}]
  %s4 = inlined_call_operand.vmem [shape: f32[32,1], index: 4, kind: input, shape index: {}]
  %s5 = inlined_call_operand.hbm [shape: f32[2,32,256], index: 5, kind: output, shape index: {}]
  %s6 = sld [smem:[#allocation0]]
  $region57: #{tpu_custom_call.1} parent=0
    _
  %s8 = ssub.s32 1, %s6
  %s9 = scalar_select 0, %s8, %s6
  $region1: #{tpu_custom_call.1} parent=0
    #allocation3 [shape = 'u8[65536]{0}', space=vmem, size = 0x10000, scoped, tag = 'input window, operand 0']
    #allocation4 [shape = 's32[2]{0}', space=sflag, size = 0x8, scoped, tag = 'scoped memory for tpu_custom_call.1']
    #allocation5 [shape = 's32[2]{0}', space=sflag, size = 0x8, scoped, tag = 'scoped memory for tpu_custom_call.1']
    #allocation6 [shape = 'u8[65536]{0}', space=vmem, size = 0x10000, scoped, tag = 'output window, operand 0']
    %10 = vsyncpa [#allocation4], 0
    %s11 = scalar_lea.sflag [#allocation4], 1
    %12 = vsyncpa %s11, 0
    %13 = vsyncpa [#allocation5], 0
    %s14 = scalar_lea.sflag [#allocation5], 1
    %15 = vsyncpa %s14, 0
    loop: start=0, step=1, limit=4
    $region2: #{tpu_custom_call.1} parent=1 // loop_pre_header
      _
    $region3: #{tpu_custom_call.1} parent=1 // loop_header
      %s17 = sphi 0, %s21
      %p18 = scmp.ge.s32.totalorder %s17, 4
      %s27 = sphi 0, %s29
      %s30 = sphi 0, %s27
      %s31 = sphi 0, %s30
      %s47 = sphi 0, %s31
      %s51 = sphi 0, %s51
      %s53 = sphi 0, %s51
      %s54 = sphi 0, %s53
      %s68 = sphi 0, %s54
      %s72 = sphi 0, %s72
      %s74 = sphi 0, %s72
      %s75 = sphi 0, %s74
      %s89 = sphi 0, %s75
      %s93 = sphi 0, %s93
      %s95 = sphi 0, %s93
      %s96 = sphi 0, %s95
      %s110 = sphi 0, %s96
      %s114 = sphi 0, %s114
      %s116 = sphi 0, %s114
      %s117 = sphi 0, %s116
      %s131 = sphi 0, %s117
      %s137 = sphi 0, %s139
      %s140 = sphi 0, %s137
      %s141 = sphi 0, %s140
      %s157 = sphi 0, %s141
    $region4: #{tpu_custom_call.1} parent=1 // loop_header_branch
      %20 = sbr.rel (%p18) target = $region8
    $region5: #{tpu_custom_call.1} parent=1 // loop_body
      %s22 = ssub.s32 %s17, 1
      %s23 = ssub.s32 %s17, 2
      %s24 = sadd.s32 %s17, 1
      %s25 = ssub.s32 %s17, %s24
      %p26 = scmp.eq.s32.totalorder %s25, 0
      %s28 = sadd.s32 %s27, 1
      %s29 = scalar_select %p26, %s27, %s28
      %p32 = pneg %p26
      %p33 = scmp.eq.s32.totalorder %s17, 1
      %p34 = por %p32, %p33
      %p35 = scmp.ne.s32.totalorder %s27, %s30
      %p36 = scmp.eq.s32.totalorder %s17, 0
      %p37 = por %p35, %p36
      %p38 = scmp.ne.s32.totalorder %s27, %s30
      %p39 = scmp.eq.s32.totalorder %s22, 1
      %p40 = por %p38, %p39
      %p41 = scmp.ne.s32.totalorder %s30, %s31
      %p42 = scmp.eq.s32.totalorder %s22, 0
      %p43 = por %p41, %p42
      %p44 = scmp.ne.s32.totalorder %s30, %s31
      %p45 = scmp.eq.s32.totalorder %s23, 1
      %p46 = por %p44, %p45
      %p48 = scmp.ne.s32.totalorder %s31, %s47
      %p49 = scmp.eq.s32.totalorder %s23, 0
      %p50 = por %p48, %p49
      %s52 = sadd.s32 %s51, 1
      %p55 = scmp.eq.s32.totalorder %s17, 1
      %p56 = scmp.ne.s32.totalorder %s51, %s53
      %p57 = scmp.eq.s32.totalorder %s17, 0
      %p58 = por %p56, %p57
      %p59 = scmp.ne.s32.totalorder %s51, %s53
      %p60 = scmp.eq.s32.totalorder %s22, 1
      %p61 = por %p59, %p60
      %p62 = scmp.ne.s32.totalorder %s53, %s54
      %p63 = scmp.eq.s32.totalorder %s22, 0
      %p64 = por %p62, %p63
      %p65 = scmp.ne.s32.totalorder %s53, %s54
      %p66 = scmp.eq.s32.totalorder %s23, 1
      %p67 = por %p65, %p66
      %p69 = scmp.ne.s32.totalorder %s54, %s68
      %p70 = scmp.eq.s32.totalorder %s23, 0
      %p71 = por %p69, %p70
      %s73 = sadd.s32 %s72, 1
      %p76 = scmp.eq.s32.totalorder %s17, 1
      %p77 = scmp.ne.s32.totalorder %s72, %s74
      %p78 = scmp.eq.s32.totalorder %s17, 0
      %p79 = por %p77, %p78
      %p80 = scmp.ne.s32.totalorder %s72, %s74
      %p81 = scmp.eq.s32.totalorder %s22, 1
      %p82 = por %p80, %p81
      %p83 = scmp.ne.s32.totalorder %s74, %s75
      %p84 = scmp.eq.s32.totalorder %s22, 0
      %p85 = por %p83, %p84
      %p86 = scmp.ne.s32.totalorder %s74, %s75
      %p87 = scmp.eq.s32.totalorder %s23, 1
      %p88 = por %p86, %p87
      %p90 = scmp.ne.s32.totalorder %s75, %s89
      %p91 = scmp.eq.s32.totalorder %s23, 0
      %p92 = por %p90, %p91
      %s94 = sadd.s32 %s93, 1
      %p97 = scmp.eq.s32.totalorder %s17, 1
      %p98 = scmp.ne.s32.totalorder %s93, %s95
      %p99 = scmp.eq.s32.totalorder %s17, 0
      %p100 = por %p98, %p99
      %p101 = scmp.ne.s32.totalorder %s93, %s95
      %p102 = scmp.eq.s32.totalorder %s22, 1
      %p103 = por %p101, %p102
      %p104 = scmp.ne.s32.totalorder %s95, %s96
      %p105 = scmp.eq.s32.totalorder %s22, 0
      %p106 = por %p104, %p105
      %p107 = scmp.ne.s32.totalorder %s95, %s96
      %p108 = scmp.eq.s32.totalorder %s23, 1
      %p109 = por %p107, %p108
      %p111 = scmp.ne.s32.totalorder %s96, %s110
      %p112 = scmp.eq.s32.totalorder %s23, 0
      %p113 = por %p111, %p112
      %s115 = sadd.s32 %s114, 1
      %p118 = scmp.eq.s32.totalorder %s17, 1
      %p119 = scmp.ne.s32.totalorder %s114, %s116
      %p120 = scmp.eq.s32.totalorder %s17, 0
      %p121 = por %p119, %p120
      %p122 = scmp.ne.s32.totalorder %s114, %s116
      %p123 = scmp.eq.s32.totalorder %s22, 1
      %p124 = por %p122, %p123
      %p125 = scmp.ne.s32.totalorder %s116, %s117
      %p126 = scmp.eq.s32.totalorder %s22, 0
      %p127 = por %p125, %p126
      %p128 = scmp.ne.s32.totalorder %s116, %s117
      %p129 = scmp.eq.s32.totalorder %s23, 1
      %p130 = por %p128, %p129
      %p132 = scmp.ne.s32.totalorder %s117, %s131
      %p133 = scmp.eq.s32.totalorder %s23, 0
      %p134 = por %p132, %p133
      %s135 = ssub.s32 %s17, %s24
      %p136 = scmp.eq.s32.totalorder %s135, 0
      %s138 = sadd.s32 %s137, 1
      %s139 = scalar_select %p136, %s137, %s138
      %p142 = pneg %p136
      %p143 = scmp.eq.s32.totalorder %s17, 1
      %p144 = por %p142, %p143
      %p145 = scmp.ne.s32.totalorder %s137, %s140
      %p146 = scmp.eq.s32.totalorder %s17, 0
      %p147 = por %p145, %p146
      %p148 = scmp.ne.s32.totalorder %s137, %s140
      %p149 = scmp.eq.s32.totalorder %s22, 1
      %p150 = por %p148, %p149
      %p151 = scmp.ne.s32.totalorder %s140, %s141
      %p152 = scmp.eq.s32.totalorder %s22, 0
      %p153 = por %p151, %p152
      %p154 = scmp.ne.s32.totalorder %s140, %s141
      %p155 = scmp.eq.s32.totalorder %s23, 1
      %p156 = por %p154, %p155
      %p158 = scmp.ne.s32.totalorder %s141, %s157
      %p159 = scmp.eq.s32.totalorder %s23, 0
      %p160 = por %p158, %p159
      %p161 = scmp.le.s32.totalorder 1, %s17
      %p162 = scmp.lt.s32.totalorder %s17, 3
      %p163 = pnand %p161, %p162
      %p164 = pneg %p163
      // Predicated region
      $region9: #{tpu_custom_call.1} parent=5 // pred_check
        _
      $region10: #{tpu_custom_call.1} parent=5 // pred_check_branch
        %166 = sbr.rel (%p163) target = $region12
      $region11: #{tpu_custom_call.1} parent=5 // pred_region
        %s167 = ssub.s32 %s17, 1
        // Predicated region
        $region13: #{tpu_custom_call.1} parent=11 // pred_check
          %p168 = pneg %p64
        $region14: #{tpu_custom_call.1} parent=11 // pred_check_branch
          %170 = sbr.rel (%p168) target = $region16
        $region15: #{tpu_custom_call.1} parent=11 // pred_region
          _
        $region16: #{tpu_custom_call.1} parent=11 // pred_fallthru
          _
        // Predicated region
        $region17: #{tpu_custom_call.1} parent=11 // pred_check
          %p171 = pneg %p85
        $region18: #{tpu_custom_call.1} parent=11 // pred_check_branch
          %173 = sbr.rel (%p171) target = $region20
        $region19: #{tpu_custom_call.1} parent=11 // pred_region
          _
        $region20: #{tpu_custom_call.1} parent=11 // pred_fallthru
          _
        // Predicated region
        $region21: #{tpu_custom_call.1} parent=11 // pred_check
          %p174 = pneg %p106
        $region22: #{tpu_custom_call.1} parent=11 // pred_check_branch
          %176 = sbr.rel (%p174) target = $region24
        $region23: #{tpu_custom_call.1} parent=11 // pred_region
          _
        $region24: #{tpu_custom_call.1} parent=11 // pred_fallthru
          _
        // Predicated region
        $region25: #{tpu_custom_call.1} parent=11 // pred_check
          %p177 = pneg %p127
        $region26: #{tpu_custom_call.1} parent=11 // pred_check_branch
          %179 = sbr.rel (%p177) target = $region28
        $region27: #{tpu_custom_call.1} parent=11 // pred_region
          _
        $region28: #{tpu_custom_call.1} parent=11 // pred_fallthru
          _
      $region12: #{tpu_custom_call.1} parent=5 // pred_fallthru
        _
      %p180 = scmp.lt.s32.totalorder %s17, 2
      // Predicated region
      $region29: #{tpu_custom_call.1} parent=5 // pred_check
        %p181 = pneg %p180
      $region30: #{tpu_custom_call.1} parent=5 // pred_check_branch
        %183 = sbr.rel (%p181) target = $region32
      $region31: #{tpu_custom_call.1} parent=5 // pred_region
        // Predicated region
        $region33: #{tpu_custom_call.1} parent=31 // pred_check
          %p184 = pneg %p37
        $region34: #{tpu_custom_call.1} parent=31 // pred_check_branch
          %186 = sbr.rel (%p184) target = $region36
        $region35: #{tpu_custom_call.1} parent=31 // pred_region
          %s187 = sand.u32 %s27, 1
          %s188 = scalar_lea.sflag [#allocation4], %s187
          %s189 = sand.u32 %s27, 1
          %s190 = smul.addr %s189, 64
          %s191 = scalar_lea.vmem [#allocation3], %s190
          %s193 = ssub.s32 1024, 1024
          %194 = vsyncadd %s188, %s193
          %s195 = smul.addr %s17, 8
          %s196 = smul.addr %s195, 128
          %s197 = scalar_lea.hbm %s0, %s196
          %s198 = sshll.u32 %s191, 4
          %s199 = int_to_ptr.vmem [resolvable:$true] %s198
          %204 = dma.hbm_to_vmem [thread:$0]  %s197, 1024, %s199, %s188, 256, 256, 16
        $region36: #{tpu_custom_call.1} parent=31 // pred_fallthru
          _
      $region32: #{tpu_custom_call.1} parent=5 // pred_fallthru
        _
      %p205 = scmp.le.s32.totalorder 1, %s17
      %p206 = scmp.lt.s32.totalorder %s17, 3
      %p207 = pnand %p205, %p206
      %p208 = pneg %p207
      // Predicated region
      $region37: #{tpu_custom_call.1} parent=5 // pred_check
        _
      $region38: #{tpu_custom_call.1} parent=5 // pred_check_branch
        %210 = sbr.rel (%p207) target = $region40
      $region39: #{tpu_custom_call.1} parent=5 // pred_region
        %s211 = ssub.s32 %s17, 1
        %s212 = sand.u32 %s30, 1
        %s213 = scalar_lea.sflag [#allocation4], %s212
        %s214 = sand.u32 %s30, 1
        %s215 = smul.addr %s214, 64
        %s216 = scalar_lea.vmem [#allocation3], %s215
        // Predicated region
        $region41: #{tpu_custom_call.1} parent=39 // pred_check
          %p217 = pneg %p43
        $region42: #{tpu_custom_call.1} parent=39 // pred_check_branch
          %219 = sbr.rel (%p217) target = $region44
        $region43: #{tpu_custom_call.1} parent=39 // pred_region
          %220 = dma.done %s213, 1024
        $region44: #{tpu_custom_call.1} parent=39 // pred_fallthru
          _
        %s221 = sand.u32 %s30, 1
        %s222 = scalar_lea.sflag [#allocation4], %s221
        %s223 = sand.u32 %s30, 1
        %s224 = smul.addr %s223, 64
        %s225 = scalar_lea.vmem [#allocation3], %s224
        %p226 = pneg %p43
        %p227 = pneg %p40
        %p228 = pneg %p64
        %p229 = pneg %p61
        %p230 = pneg %p85
        %p231 = pneg %p82
        %p232 = pneg %p106
        %p233 = pneg %p103
        %p234 = pneg %p127
        %p235 = pneg %p124
        %p236 = pneg %p153
        %p237 = pneg %p150
        %s238 = sand.u32 %s140, 1
        %s239 = scalar_lea.sflag [#allocation5], %s238
        %s240 = sand.u32 %s140, 1
        %s241 = smul.addr %s240, 64
        %s242 = scalar_lea.vmem [#allocation6], %s241
        %v243 = vld [vmem:[%s216] sm:$0xff]
        %v244 = vld [vmem:[%s216 + $0x8] sm:$0xff]
        %v245 = vld [vmem:[%s216 + $0x10] sm:$0xff]
        %v246 = vld [vmem:[%s216 + $0x18] sm:$0xff]
        %v247 = vld [vmem:[%s216 + $0x20] sm:$0xff]
        %v248 = vld [vmem:[%s216 + $0x28] sm:$0xff]
        %v249 = vld [vmem:[%s216 + $0x30] sm:$0xff]
        %v250 = vld [vmem:[%s216 + $0x38] sm:$0xff]
        %v251 = vmax.f32 %v243, %v244
        %252 = vmax.xlane.f32.xlu0 %v251
        %v253 = vpop.xlane.xlu0 %252
        %v254 = vmax.f32 %v245, %v246
        %255 = vmax.xlane.f32.xlu0 %v254
        %v256 = vpop.xlane.xlu0 %255
        %v257 = vmax.f32 %v247, %v248
        %258 = vmax.xlane.f32.xlu0 %v257
        %v259 = vpop.xlane.xlu0 %258
        %v260 = vmax.f32 %v249, %v250
        %261 = vmax.xlane.f32.xlu0 %v260
        %v262 = vpop.xlane.xlu0 %261
        %vm263 = vcmask 7168
        %264 = vst.msk [vmem:[#allocation2] sm:$0xff] %vm263, %v253
        %265 = vst.msk [vmem:[#allocation2 + $0x8] sm:$0xff] %vm263, %v256
        %266 = vst.msk [vmem:[#allocation2 + $0x10] sm:$0xff] %vm263, %v259
        %267 = vst.msk [vmem:[#allocation2 + $0x18] sm:$0xff] %vm263, %v262
        %v268 = vadd.f32 %v243, %v244
        %269 = vadd.xlane.f32.xlu0 %v268
        %v270 = vpop.xlane.xlu0 %269
        %v271 = vadd.f32 %v245, %v246
        %272 = vadd.xlane.f32.xlu0 %v271
        %v273 = vpop.xlane.xlu0 %272
        %v274 = vadd.f32 %v247, %v248
        %275 = vadd.xlane.f32.xlu0 %v274
        %v276 = vpop.xlane.xlu0 %275
        %v277 = vadd.f32 %v249, %v250
        %278 = vadd.xlane.f32.xlu0 %v277
        %v279 = vpop.xlane.xlu0 %278
        %v280 = vmul.f32 %v270, 0.00390625
        %v281 = vmul.f32 %v273, 0.00390625
        %v282 = vmul.f32 %v276, 0.00390625
        %v283 = vmul.f32 %v279, 0.00390625
        %vm284 = vcmask 15368
        %285 = vst.msk [vmem:[#allocation2] sm:$0xff] %vm284, %v280
        %286 = vst.msk [vmem:[#allocation2 + $0x8] sm:$0xff] %vm284, %v281
        %287 = vst.msk [vmem:[#allocation2 + $0x10] sm:$0xff] %vm284, %v282
        %288 = vst.msk [vmem:[#allocation2 + $0x18] sm:$0xff] %vm284, %v283
        %v289 = vld [vmem:[#allocation2] sm:$0xff]
        %v290 = vld [vmem:[#allocation2 + $0x8] sm:$0xff]
        %v291 = vld [vmem:[#allocation2 + $0x10] sm:$0xff]
        %v292 = vld [vmem:[#allocation2 + $0x18] sm:$0xff]
        %v293 = vld [vmem:[%s1] sm:$0xff]
        %v294 = vld [vmem:[%s2] sm:$0xff]
        %v295 = vld [vmem:[%s3] sm:$0xff]
        %v296 = vld [vmem:[%s3 + $0x8] sm:$0xff]
        %v297 = vld [vmem:[%s3 + $0x10] sm:$0xff]
        %v298 = vld [vmem:[%s3 + $0x18] sm:$0xff]
        %v299 = vld [vmem:[%s4] sm:$0xff]
        %v300 = vld [vmem:[%s4 + $0x8] sm:$0xff]
        %v301 = vld [vmem:[%s4 + $0x10] sm:$0xff]
        %v302 = vld [vmem:[%s4 + $0x18] sm:$0xff]
        %304 = vset.pattern.permute.xlu0 0
        %305 = vperm.xlu0 %304, %v294
        %v306 = vpop.permute.xlu0 %305
        %vm308 = vcmask 261120
        %v310 = vsel %vm308, %v293, 0
        %312 = vmatprep.subr.mxu0 0.0
        %313 = vmatpush1.msra.mxu0 0.0
        %314 = vmatprep.subr.mxu0 0.0
        %315 = vmatpush1.msra.mxu0 0.0
        %316 = vmatprep.subr.mxu0 0.0
        %317 = vmatpush1.msra.mxu0 0.0
        %318 = vmatprep.subr.mxu0 0.0
        %319 = vmatpush1.msra.mxu0 0.0
        %320 = vmatprep.subr.mxu0 0.0
        %321 = vmatpush1.msra.mxu0 0.0
        %322 = vmatprep.subr.mxu0 0.0
        %323 = vmatpush1.msra.mxu0 0.0
        %324 = vmatprep.subr.mxu0 0.0
        %325 = vmatpush1.msra.mxu0 0.0
        %326 = vmatprep.subr.mxu0 0.0
        %327 = vmatpush1.msra.mxu0 0.0
        %328 = vmatprep.subr.mxu0 0.0
        %329 = vmatpush1.msra.mxu0 0.0
        %330 = vmatprep.subr.mxu0 0.0
        %331 = vmatpush1.msra.mxu0 0.0
        %332 = vmatprep.subr.mxu0 0.0
        %333 = vmatpush1.msra.mxu0 0.0
        %334 = vmatprep.subr.mxu0 0.0
        %335 = vmatpush1.msra.mxu0 0.0
        %336 = vmatprep.subr.mxu0 0.0
        %337 = vmatpush1.msra.mxu0 %v292
        %338 = vmatprep.subr.mxu0 0.0
        %339 = vmatpush1.msra.mxu0 %v291
        %340 = vmatprep.subr.mxu0 0.0
        %341 = vmatpush1.msra.mxu0 %v290
        %342 = vmatprep.subr.mxu0 0.0
        %343 = vmatpush1.msra.mxu0 %v289
        %344 = vmatprep.subr.mxu0 0.0
        %345 = vmatpush2.msra.mxu0 0.0
        %346 = vmatprep.subr.mxu0 0.0
        %347 = vmatpush2.msra.mxu0 0.0
        %348 = vmatprep.subr.mxu0 0.0
        %349 = vmatpush2.msra.mxu0 0.0
        %350 = vmatprep.subr.mxu0 0.0
        %351 = vmatpush2.msra.mxu0 0.0
        %352 = vmatprep.subr.mxu0 0.0
        %353 = vmatpush2.msra.mxu0 0.0
        %354 = vmatprep.subr.mxu0 0.0
        %355 = vmatpush2.msra.mxu0 0.0
        %356 = vmatprep.subr.mxu0 0.0
        %357 = vmatpush2.msra.mxu0 0.0
        %358 = vmatprep.subr.mxu0 0.0
        %359 = vmatpush2.msra.mxu0 0.0
        %360 = vmatprep.subr.mxu0 0.0
        %361 = vmatpush2.msra.mxu0 0.0
        %362 = vmatprep.subr.mxu0 0.0
        %363 = vmatpush2.msra.mxu0 0.0
        %364 = vmatprep.subr.mxu0 0.0
        %365 = vmatpush2.msra.mxu0 0.0
        %366 = vmatprep.subr.mxu0 0.0
        %367 = vmatpush2.msra.mxu0 0.0
        %368 = vmatprep.subr.mxu0 0.0
        %369 = vmatpush2.msra.mxu0 0.0
        %370 = vmatprep.subr.mxu0 0.0
        %371 = vmatpush2.msra.mxu0 0.0
        %372 = vmatprep.subr.mxu0 0.0
        %373 = vmatpush2.msra.mxu0 0.0
        %374 = vmatprep.subr.mxu0 0.0
        %375 = vmatpush2.msra.mxu0 0.0
        %376 = vmatprep.mubr.f32.mxu0 0.0
        %377 = vmatmul.mubr.f32.gmra.mxu0 %v310
        %v378 = vpop.f32.mrf.mxu0
        %v379 = vadd.f32 %v306, %v378
        %v380 = vpop.f32.mrf.mxu0
        %381 = vdwg.mxu0
        %v382 = vmax.f32 %v379, 0.0
        %384 = vset.pattern.permute.xlu0 0
        %385 = vperm.xlu0 %384, %v299
        %v386 = vpop.permute.xlu0 %385
        %389 = vset.pattern.permute.xlu0 0
        %390 = vperm.xlu0 %389, %v300
        %v391 = vpop.permute.xlu0 %390
        %394 = vset.pattern.permute.xlu0 0
        %395 = vperm.xlu0 %394, %v301
        %v396 = vpop.permute.xlu0 %395
        %399 = vset.pattern.permute.xlu0 0
        %400 = vperm.xlu0 %399, %v302
        %v401 = vpop.permute.xlu0 %400
        %vm403 = vcmask 64512
        %v405 = vsel %vm403, %v295, 0
        %v408 = vsel %vm403, %v296, 0
        %v411 = vsel %vm403, %v297, 0
        %v414 = vsel %vm403, %v298, 0
        %416 = vmatprep.subr.mxu0 0.0
        %417 = vmatpush1.msra.mxu0 0.0
        %418 = vmatprep.subr.mxu0 0.0
        %419 = vmatpush1.msra.mxu0 0.0
        %420 = vmatprep.subr.mxu0 0.0
        %421 = vmatpush1.msra.mxu0 0.0
        %422 = vmatprep.subr.mxu0 0.0
        %423 = vmatpush1.msra.mxu0 0.0
        %424 = vmatprep.subr.mxu0 0.0
        %425 = vmatpush1.msra.mxu0 0.0
        %426 = vmatprep.subr.mxu0 0.0
        %427 = vmatpush1.msra.mxu0 0.0
        %428 = vmatprep.subr.mxu0 0.0
        %429 = vmatpush1.msra.mxu0 0.0
        %430 = vmatprep.subr.mxu0 0.0
        %431 = vmatpush1.msra.mxu0 0.0
        %432 = vmatprep.subr.mxu0 0.0
        %433 = vmatpush1.msra.mxu0 0.0
        %434 = vmatprep.subr.mxu0 0.0
        %435 = vmatpush1.msra.mxu0 0.0
        %436 = vmatprep.subr.mxu0 0.0
        %437 = vmatpush1.msra.mxu0 0.0
        %438 = vmatprep.subr.mxu0 0.0
        %439 = vmatpush1.msra.mxu0 0.0
        %440 = vmatprep.subr.mxu0 0.0
        %441 = vmatpush1.msra.mxu0 0.0
        %442 = vmatprep.subr.mxu0 0.0
        %443 = vmatpush1.msra.mxu0 0.0
        %444 = vmatprep.subr.mxu0 0.0
        %445 = vmatpush1.msra.mxu0 0.0
        %446 = vmatprep.subr.mxu0 0.0
        %447 = vmatpush1.msra.mxu0 %v382
        %448 = vmatprep.subr.mxu0 0.0
        %449 = vmatpush2.msra.mxu0 0.0
        %450 = vmatprep.subr.mxu0 0.0
        %451 = vmatpush2.msra.mxu0 0.0
        %452 = vmatprep.subr.mxu0 0.0
        %453 = vmatpush2.msra.mxu0 0.0
        %454 = vmatprep.subr.mxu0 0.0
        %455 = vmatpush2.msra.mxu0 0.0
        %456 = vmatprep.subr.mxu0 0.0
        %457 = vmatpush2.msra.mxu0 0.0
        %458 = vmatprep.subr.mxu0 0.0
        %459 = vmatpush2.msra.mxu0 0.0
        %460 = vmatprep.subr.mxu0 0.0
        %461 = vmatpush2.msra.mxu0 0.0
        %462 = vmatprep.subr.mxu0 0.0
        %463 = vmatpush2.msra.mxu0 0.0
        %464 = vmatprep.subr.mxu0 0.0
        %465 = vmatpush2.msra.mxu0 0.0
        %466 = vmatprep.subr.mxu0 0.0
        %467 = vmatpush2.msra.mxu0 0.0
        %468 = vmatprep.subr.mxu0 0.0
        %469 = vmatpush2.msra.mxu0 0.0
        %470 = vmatprep.subr.mxu0 0.0
        %471 = vmatpush2.msra.mxu0 0.0
        %472 = vmatprep.subr.mxu0 0.0
        %473 = vmatpush2.msra.mxu0 0.0
        %474 = vmatprep.subr.mxu0 0.0
        %475 = vmatpush2.msra.mxu0 0.0
        %476 = vmatprep.subr.mxu0 0.0
        %477 = vmatpush2.msra.mxu0 0.0
        %478 = vmatprep.subr.mxu0 0.0
        %479 = vmatpush2.msra.mxu0 0.0
        %480 = vmatprep.mubr.f32.mxu0 0.0
        %481 = vmatmul.mubr.f32.gmra.mxu0 %v405
        %v482 = vpop.f32.mrf.mxu0
        %v483 = vadd.f32 %v386, %v482
        %v484 = vpop.f32.mrf.mxu0
        %485 = vmatprep.mubr.f32.mxu0 0.0
        %486 = vmatmul.mubr.f32.gmra.mxu0 %v408
        %v487 = vpop.f32.mrf.mxu0
        %v488 = vadd.f32 %v391, %v487
        %v489 = vpop.f32.mrf.mxu0
        %490 = vmatprep.mubr.f32.mxu0 0.0
        %491 = vmatmul.mubr.f32.gmra.mxu0 %v411
        %v492 = vpop.f32.mrf.mxu0
        %v493 = vadd.f32 %v396, %v492
        %v494 = vpop.f32.mrf.mxu0
        %495 = vmatprep.mubr.f32.mxu0 0.0
        %496 = vmatmul.mubr.f32.gmra.mxu0 %v414
        %v497 = vpop.f32.mrf.mxu0
        %v498 = vadd.f32 %v401, %v497
        %v499 = vpop.f32.mrf.mxu0
        %500 = vdwg.mxu0
        %505 = vrot.lane.b32.xlu0 %v483, 127
        %v506 = vpop.permute.xlu0 %505
        %507 = vrot.lane.b32.xlu0 %v488, 127
        %v508 = vpop.permute.xlu0 %507
        %509 = vrot.lane.b32.xlu0 %v493, 127
        %v510 = vpop.permute.xlu0 %509
        %511 = vrot.lane.b32.xlu0 %v498, 127
        %v512 = vpop.permute.xlu0 %511
        %v517 = vadd.f32 %v483, %v506
        %v518 = vadd.f32 %v488, %v508
        %v519 = vadd.f32 %v493, %v510
        %v520 = vadd.f32 %v498, %v512
        %v521 = vxor.u32 %v517, 2147483648
        %v522 = vxor.u32 %v518, 2147483648
        %v523 = vxor.u32 %v519, 2147483648
        %v524 = vxor.u32 %v520, 2147483648
        %v525 = vmul.f32 %v521, 1.442695
        %v526 = vpow.pop %v525
        %v527 = vmul.f32 %v522, 1.442695
        %v528 = vpow.pop %v527
        %v529 = vmul.f32 %v523, 1.442695
        %v530 = vpow.pop %v529
        %v531 = vmul.f32 %v524, 1.442695
        %v532 = vpow.pop %v531
        %v533 = vadd.f32 %v526, 1.0
        %v534 = vadd.f32 %v528, 1.0
        %v535 = vadd.f32 %v530, 1.0
        %v536 = vadd.f32 %v532, 1.0
        %v537 = vrcp.pop %v533
        %v538 = vmul.f32 1.0, %v537
        %v539 = vrcp.pop %v534
        %v540 = vmul.f32 1.0, %v539
        %v541 = vrcp.pop %v535
        %v542 = vmul.f32 1.0, %v541
        %v543 = vrcp.pop %v536
        %v544 = vmul.f32 1.0, %v543
        %546 = vset.pattern.permute.xlu0 0
        %547 = vperm.xlu0 %546, %v538
        %v548 = vpop.permute.xlu0 %547
        %551 = vset.pattern.permute.xlu0 0
        %552 = vperm.xlu0 %551, %v540
        %v553 = vpop.permute.xlu0 %552
        %556 = vset.pattern.permute.xlu0 0
        %557 = vperm.xlu0 %556, %v542
        %v558 = vpop.permute.xlu0 %557
        %561 = vset.pattern.permute.xlu0 0
        %562 = vperm.xlu0 %561, %v544
        %v563 = vpop.permute.xlu0 %562
        %v565 = vmul.f32 %v243, %v548
        %v566 = vmul.f32 %v244, %v548
        %v567 = vmul.f32 %v245, %v553
        %v568 = vmul.f32 %v246, %v553
        %v569 = vmul.f32 %v247, %v558
        %v570 = vmul.f32 %v248, %v558
        %v571 = vmul.f32 %v249, %v563
        %v572 = vmul.f32 %v250, %v563
        %573 = vst [vmem:[%s242] sm:$0xff] %v565
        %574 = vst [vmem:[%s242 + $0x8] sm:$0xff] %v566
        %575 = vst [vmem:[%s242 + $0x10] sm:$0xff] %v567
        %576 = vst [vmem:[%s242 + $0x18] sm:$0xff] %v568
        %577 = vst [vmem:[%s242 + $0x20] sm:$0xff] %v569
        %578 = vst [vmem:[%s242 + $0x28] sm:$0xff] %v570
        %579 = vst [vmem:[%s242 + $0x30] sm:$0xff] %v571
        %580 = vst [vmem:[%s242 + $0x38] sm:$0xff] %v572
        %s581 = sand.u32 %s140, 1
        %s582 = scalar_lea.sflag [#allocation5], %s581
        %s583 = sand.u32 %s140, 1
        %s584 = smul.addr %s583, 64
        %s585 = scalar_lea.vmem [#allocation6], %s584
        // Predicated region
        $region45: #{tpu_custom_call.1} parent=39 // pred_check
          %p586 = pneg %p150
        $region46: #{tpu_custom_call.1} parent=39 // pred_check_branch
          %588 = sbr.rel (%p586) target = $region48
        $region47: #{tpu_custom_call.1} parent=39 // pred_region
          %s590 = ssub.s32 1024, 1024
          %591 = vsyncadd %s582, %s590
          %s592 = smul.addr %s22, 8
          %s593 = smul.addr %s592, 128
          %s594 = scalar_lea.hbm %s5, %s593
          %s595 = sshll.u32 %s585, 4
          %s596 = int_to_ptr.vmem [resolvable:$true] %s595
          %601 = dma.vmem_to_hbm [thread:$0]  %s596, 1024, %s594, %s582, 256, 256, 16
        $region48: #{tpu_custom_call.1} parent=39 // pred_fallthru
          _
      $region40: #{tpu_custom_call.1} parent=5 // pred_fallthru
        _
      %p602 = scmp.le.s32.totalorder 2, %s17
      // Predicated region
      $region49: #{tpu_custom_call.1} parent=5 // pred_check
        %p603 = pneg %p602
      $region50: #{tpu_custom_call.1} parent=5 // pred_check_branch
        %605 = sbr.rel (%p603) target = $region52
      $region51: #{tpu_custom_call.1} parent=5 // pred_region
        %s606 = ssub.s32 %s17, 2
        // Predicated region
        $region53: #{tpu_custom_call.1} parent=51 // pred_check
          %p607 = pneg %p156
        $region54: #{tpu_custom_call.1} parent=51 // pred_check_branch
          %609 = sbr.rel (%p607) target = $region56
        $region55: #{tpu_custom_call.1} parent=51 // pred_region
          %s610 = sand.u32 %s141, 1
          %s611 = scalar_lea.sflag [#allocation5], %s610
          %s612 = sand.u32 %s141, 1
          %s613 = smul.addr %s612, 64
          %s614 = scalar_lea.vmem [#allocation6], %s613
          %615 = dma.done %s611, 1024
        $region56: #{tpu_custom_call.1} parent=51 // pred_fallthru
          _
      $region52: #{tpu_custom_call.1} parent=5 // pred_fallthru
        _
    $region6: #{tpu_custom_call.1} parent=1 // loop_footer
      %s21 = sadd.s32 1, %s17
    $region7: #{tpu_custom_call.1} parent=1 // loop_footer_branch
      %16 = sbr.rel target = $region3
    $region8: #{tpu_custom_call.1} parent=1 // loop_exit
      _
    %616 = vsyncpa [#allocation4], 1
    %s617 = scalar_lea.sflag [#allocation4], 1
    %618 = vsyncpa %s617, 1
    %619 = vsyncpa [#allocation5], 1
    %s620 = scalar_lea.sflag [#allocation5], 1
    %621 = vsyncpa %s620, 1

</llo_original>
